<compile_context>
chip_gen: v5e
topology: v5e:2x2
jax: 0.10.0
libtpu: 0.0.40
codegen_flags: <defaults>
</compile_context>

<pallas_src>
import jax
import jax.numpy as jnp
from jax.experimental import pallas as pl
from jax.experimental.pallas import tpu as pltpu


def linear_kernel(x_ref, w_ref, b_ref, o_ref):
    # One MXU pass (f32 accumulate) + one VPU broadcast-add for the bias.
    acc = jnp.dot(x_ref[...], w_ref[...], preferred_element_type=jnp.float32)
    o_ref[...] = (acc + b_ref[...]).astype(o_ref.dtype)


def custom_linear(x, w, b):
    B, In = x.shape
    In2, Out = w.shape
    assert In == In2 and b.shape == (Out,)

    # Bias as a (1, Out) row so the in-kernel add is a plain 2-D broadcast.
    b2 = b.reshape(1, Out)

    cost = pl.CostEstimate(
        flops=2 * B * In * Out,
        transcendentals=0,
        bytes_accessed=4 * (B * In + In * Out + Out + B * Out),
    )

    vmem = pltpu.MemorySpace.VMEM
    return pl.pallas_call(
        linear_kernel,
        out_shape=jax.ShapeDtypeStruct((B, Out), x.dtype),
        in_specs=[
            pl.BlockSpec(memory_space=vmem),
            pl.BlockSpec(memory_space=vmem),
            pl.BlockSpec(memory_space=vmem),
        ],
        out_specs=pl.BlockSpec(memory_space=vmem),
        cost_estimate=cost,
    )(x, w, b2)


if __name__ == "__main__":
    key = jax.random.PRNGKey(0)
    kx, kw, kb = jax.random.split(key, 3)

    input_size, output_size, batch = 10, 5, 16
    x = jax.random.normal(kx, (batch, input_size), dtype=jnp.float32)
    # Deterministic "randn"-style parameter init (module's __init__ shapes).
    w = jax.random.normal(kw, (input_size, output_size), dtype=jnp.float32)
    b = jax.random.normal(kb, (output_size,), dtype=jnp.float32)

    fwd = jax.jit(custom_linear)
    y = fwd(x, w, b)
    jax.block_until_ready(y)

    # Correctness check against plain JAX reference.
    y_ref = x @ w + b
    assert y.shape == (batch, output_size)
    assert jnp.allclose(y, y_ref, atol=1e-5, rtol=1e-5)

    print("KERNEL_OK")
</pallas_src>

<mosaic_0001>
module attributes {stable_mosaic.version = 11 : i64} {
  func.func @linear_kernel(%arg0: memref<16x10xf32, #tpu.memory_space<vmem>>, %arg1: memref<10x5xf32, #tpu.memory_space<vmem>>, %arg2: memref<1x5xf32, #tpu.memory_space<vmem>>, %arg3: memref<16x5xf32, #tpu.memory_space<vmem>>) attributes {dimension_semantics = [], scalar_prefetch = 0 : i64, scratch_operands = 0 : i64, tpu.core_type = #tpu.core_type<tc>} {
    %c0 = arith.constant 0 : index
    %c0_0 = arith.constant 0 : index
    %0 = vector.load %arg0[%c0, %c0_0] : memref<16x10xf32, #tpu.memory_space<vmem>>, vector<16x10xf32>
    %c0_1 = arith.constant 0 : index
    %c0_2 = arith.constant 0 : index
    %1 = vector.load %arg1[%c0_1, %c0_2] : memref<10x5xf32, #tpu.memory_space<vmem>>, vector<10x5xf32>
    %cst = arith.constant dense<0.000000e+00> : vector<16x5xf32>
    %2 = tpu.matmul %0, %1, %cst {dimension_numbers = #tpu.dot_dimension_numbers<[1], [0], [0], [1], [0, 0, 1, 1], [], []>} : vector<16x10xf32>, vector<10x5xf32>, vector<16x5xf32> -> vector<16x5xf32>
    %c0_3 = arith.constant 0 : index
    %c0_4 = arith.constant 0 : index
    %3 = vector.load %arg2[%c0_3, %c0_4] : memref<1x5xf32, #tpu.memory_space<vmem>>, vector<1x5xf32>
    %4 = vector.broadcast %3 : vector<1x5xf32> to vector<16x5xf32>
    %5 = arith.addf %2, %4 : vector<16x5xf32>
    %c0_5 = arith.constant 0 : index
    %c0_6 = arith.constant 0 : index
    %6 = vector.load %arg3[%c0_5, %c0_6] : memref<16x5xf32, #tpu.memory_space<vmem>>, vector<16x5xf32>
    tpu.vector_store %arg3[%c0_5, %c0_6], %5 {strides = array<i32>} : memref<16x5xf32, #tpu.memory_space<vmem>>, vector<16x5xf32>,
    return
  }
}

</mosaic_0001>

<llo_original>
// kernel: custom_linear.1
$region0: #{custom_linear.1}
  #allocation0 [shape = 'u32[]', space=smem, size = 0x4, offset = 0x4, fixed_abs, tag = 'smem constant byte address 0x4 - core index']
  #allocation1 [shape = 'u32[72,128]{1,0:T(1,128)}', space=vmem, size = 0x9000, scoped, tag = 'internal scratch']
  %s0 = inlined_call_operand.vmem [shape: f32[16,10], index: 0, kind: input, shape index: {}]
  %s1 = inlined_call_operand.vmem [shape: f32[10,5], index: 1, kind: input, shape index: {}]
  %s2 = inlined_call_operand.vmem [shape: f32[1,5], index: 2, kind: input, shape index: {}]
  %s3 = inlined_call_operand.vmem [shape: f32[16,5], index: 3, kind: output, shape index: {}]
  %s4 = sld [smem:[#allocation0]]
  $region22: #{custom_linear.1} parent=0
    _
  %s6 = ssub.s32 1, %s4
  %s7 = scalar_select 0, %s6, %s4
  // Predicated region
  $region2: #{custom_linear.1} parent=0 // pred_check
    _
  $region3: #{custom_linear.1} parent=0 // pred_check_branch
    %9 = sbr.rel (0) target = $region5
  $region4: #{custom_linear.1} parent=0 // pred_region
    _
  $region5: #{custom_linear.1} parent=0 // pred_fallthru
    _
  // Predicated region
  $region6: #{custom_linear.1} parent=0 // pred_check
    _
  $region7: #{custom_linear.1} parent=0 // pred_check_branch
    %11 = sbr.rel (0) target = $region9
  $region8: #{custom_linear.1} parent=0 // pred_region
    _
  $region9: #{custom_linear.1} parent=0 // pred_fallthru
    _
  // Predicated region
  $region10: #{custom_linear.1} parent=0 // pred_check
    _
  $region11: #{custom_linear.1} parent=0 // pred_check_branch
    %13 = sbr.rel (0) target = $region13
  $region12: #{custom_linear.1} parent=0 // pred_region
    _
  $region13: #{custom_linear.1} parent=0 // pred_fallthru
    _
  %v14 = vld [vmem:[%s0] sm:$0xff]
  %v15 = vld [vmem:[%s0 + $0x8] sm:$0xff]
  %v16 = vld [vmem:[%s1] sm:$0xff]
  %v17 = vld [vmem:[%s1 + $0x8] sm:$0x3]
  %v18 = vld [vmem:[%s2] sm:$0x1]
  %v20 = vperm.slane %v18, 0
  %vm22 = vcmask 80896
  %v24 = vsel %vm22, %v14, 0
  %v27 = vsel %vm22, %v15, 0
  %vm29 = vcmask 1041408
  %v31 = vsel %vm29, %v17, 0
  %33 = vmatpush.msra.mxu0 0.0
  %34 = vmatpush.msra.mxu0 0.0
  %35 = vmatpush.msra.mxu0 0.0
  %36 = vmatpush.msra.mxu0 0.0
  %37 = vmatpush.msra.mxu0 0.0
  %38 = vmatpush.msra.mxu0 0.0
  %39 = vmatpush.msra.mxu0 0.0
  %40 = vmatpush.msra.mxu0 0.0
  %41 = vmatpush.msra.mxu0 0.0
  %42 = vmatpush.msra.mxu0 0.0
  %43 = vmatpush.msra.mxu0 0.0
  %44 = vmatpush.msra.mxu0 0.0
  %45 = vmatpush.msra.mxu0 0.0
  %46 = vmatpush.msra.mxu0 0.0
  %47 = vmatpush.msra.mxu0 %v31
  %48 = vmatpush.msra.mxu0 %v16
  %49 = vmatmul.f32.gmra.mxu0 %v24
  %v50 = vpop.f32.mrf.mxu0
  %v51 = vadd.f32 %v20, %v50
  %52 = vmatmul.f32.gmra.mxu0 %v27
  %v53 = vpop.f32.mrf.mxu0
  %v54 = vadd.f32 %v20, %v53
  %55 = vdwg.mxu0
  %vm56 = vcmask 39936
  %57 = vst.msk [vmem:[%s3] sm:$0xff] %vm56, %v51
  %58 = vst.msk [vmem:[%s3 + $0x8] sm:$0xff] %vm56, %v54
  // Predicated region
  $region14: #{custom_linear.1} parent=0 // pred_check
    _
  $region15: #{custom_linear.1} parent=0 // pred_check_branch
    %60 = sbr.rel (0) target = $region17
  $region16: #{custom_linear.1} parent=0 // pred_region
    _
  $region17: #{custom_linear.1} parent=0 // pred_fallthru
    _
  // Predicated region
  $region18: #{custom_linear.1} parent=0 // pred_check
    _
  $region19: #{custom_linear.1} parent=0 // pred_check_branch
    %62 = sbr.rel (0) target = $region21
  $region20: #{custom_linear.1} parent=0 // pred_region
    _
  $region21: #{custom_linear.1} parent=0 // pred_fallthru
    _

</llo_original>
